<compile_context>
chip_gen: v6e
topology: v6e:2x2x1
jax: 0.10.0
libtpu: 0.0.40
codegen_flags: <defaults>
</compile_context>

<pallas_src>
import functools

import jax
import jax.numpy as jnp
from jax.experimental import pallas as pl
from jax.experimental.pallas import tpu as pltpu

EPS = 1e-8  # MultichannelLayerNorm eps


@functools.lru_cache(maxsize=None)
def _roll_matches_numpy():
    """One-time semantic probe: does pltpu.roll follow jnp.roll's sign convention?

    The LN roll-tree is direction-agnostic (full cyclic sum), but the conv taps
    are not, so we pin the hardware convention once and bake it as a static.
    """
    def probe(x_ref, o_ref):
        o_ref[...] = pltpu.roll(x_ref[...], 1, axis=1)

    x = jnp.tile(jnp.arange(128, dtype=jnp.float32)[None, :], (8, 1))
    y = pl.pallas_call(probe,
                       out_shape=jax.ShapeDtypeStruct((8, 128), jnp.float32))(x)
    return bool(y[0, 0] == 127.0)  # jnp.roll(row, 1)[0] == row[-1] == 127


def res_block_kernel(x_ref, mask_ref, lnw_ref, lnb_ref,
                     w1_ref, w2_ref, wid_ref, o_ref, stack_ref,
                     *, h_size, row_stride, roll_is_numpy):
    x = x_ref[...].astype(jnp.float32)            # (Cin, L), L = H*B*W
    length = x.shape[1]
    masks = mask_ref[...]                         # (9, L) per-tap boundary masks

    # ---- MultichannelLayerNorm over the feature axis h (exact f32) ---------
    # Lane m = (h*B + b)*W + w, so a cyclic roll by k*row_stride maps
    # h -> (h +/- k) mod H with (b, w) fixed; the log2(H) doubling tree thus
    # sums all H rows per (c, b, w) regardless of roll direction.
    def mean_over_h(v):
        s = v
        shift = row_stride
        for _ in range(h_size.bit_length() - 1):  # log2(H) roll+add steps
            s = s + pltpu.roll(s, shift, axis=1)
            shift *= 2
        return s * (1.0 / h_size)

    mean = mean_over_h(x)
    xc = x - mean
    var = mean_over_h(xc * xc)                    # two-pass (exact) variance
    xn = xc * jax.lax.rsqrt(var + EPS)
    xn = xn * lnw_ref[...] + lnb_ref[...]         # affine, pre-broadcast (Cin, L)

    # ---- 3x3 conv (padding=1, stride=1, no bias): one im2col MXU matmul ----
    def conv3x3(inp, w_ref):
        c = inp.shape[0]
        for kh in range(3):
            for kw in range(3):
                t = kh * 3 + kw
                if kh == 1 and kw == 1:
                    tap = inp                      # center tap: no shift, no mask
                else:
                    d = (kh - 1) * row_stride + (kw - 1)   # lane displacement
                    shift = (-d) % length if roll_is_numpy else d % length
                    tap = pltpu.roll(inp, shift, axis=1)
                    tap = tap * masks[t:t + 1, :]  # zero invalid halo lanes
                # bf16 staging: halves bytes through the vst/vld slots.
                stack_ref[t * c:(t + 1) * c, :] = tap.astype(jnp.bfloat16)
        return jnp.dot(w_ref[...], stack_ref[0:9 * c, :],
                       preferred_element_type=jnp.float32)          # (Cout, L)

    h = conv3x3(xn, w1_ref)                       # conv1
    h = jnp.square(jnp.maximum(h, 0.0))           # SquaredReLU (f32)
    h = conv3x3(h, w2_ref)                        # conv2

    # ---- 1x1 identity conv (in_channels != out_channels), f32 --------------
    xid = jnp.dot(wid_ref[...], x, preferred_element_type=jnp.float32)

    # dropout = 0 -> identity on h
    o_ref[...] = (xid + h).astype(o_ref.dtype)


@functools.partial(jax.jit, static_argnums=(6,))
def _res_block_impl(x, ln_w, ln_b, w1, w2, w_id, roll_is_numpy):
    B, Cin, H, W = x.shape
    Cout = w1.shape[0]
    assert H > 1 and (H & (H - 1)) == 0, "roll-tree LN needs power-of-two features"
    # TODO(synk): non-power-of-two H would need a factorized (L,H)x(H,L) pooling
    #             matmul fallback for the LayerNorm reduction.
    rs = B * W                                    # lane stride between h rows
    L = H * rs

    # h-major interleaved lane-dense layout: lane m = (h*B + b)*W + w.
    x_flat = jnp.transpose(x, (1, 2, 0, 3)).reshape(Cin, L)

    # Precomputed combined per-tap boundary masks (1 = valid source lane).
    lane = jnp.arange(L, dtype=jnp.int32)
    h_idx = lane // rs
    w_idx = lane % W

    def tap_mask(kh, kw):
        m = jnp.ones((L,), jnp.bool_)
        if kh == 0:
            m = m & (h_idx > 0)
        if kh == 2:
            m = m & (h_idx < H - 1)
        if kw == 0:
            m = m & (w_idx > 0)
        if kw == 2:
            m = m & (w_idx < W - 1)
        return m

    masks = jnp.stack([tap_mask(kh, kw) for kh in range(3) for kw in range(3)],
                      axis=0).astype(jnp.float32)                    # (9, L)

    # LN affine params pre-broadcast into the lane-dense layout (per (c, h)).
    lnw_b = jnp.repeat(ln_w, rs, axis=1)                             # (Cin, L)
    lnb_b = jnp.repeat(ln_b, rs, axis=1)                             # (Cin, L)

    # im2col-packed conv weights: [co, (kh*3 + kw)*C + ci], bf16 for the MXU.
    w1p = jnp.transpose(w1, (0, 2, 3, 1)).reshape(Cout, 9 * Cin).astype(jnp.bfloat16)
    w2p = jnp.transpose(w2, (0, 2, 3, 1)).reshape(Cout, 9 * Cout).astype(jnp.bfloat16)

    out_flat = pl.pallas_call(
        functools.partial(res_block_kernel, h_size=H, row_stride=rs,
                          roll_is_numpy=roll_is_numpy),
        out_shape=jax.ShapeDtypeStruct((Cout, L), x.dtype),
        # Persistent bf16 im2col staging buffer shared by both convs.
        scratch_shapes=[pltpu.VMEM((9 * max(Cin, Cout), L), jnp.bfloat16)],
    )(x_flat, masks, lnw_b, lnb_b, w1p, w2p, w_id)

    return jnp.transpose(out_flat.reshape(Cout, H, B, W), (2, 0, 1, 3))


def res_block_forward(x, ln_w, ln_b, w1, w2, w_id):
    return _res_block_impl(x, ln_w, ln_b, w1, w2, w_id, _roll_matches_numpy())


def ref_forward(x, ln_w, ln_b, w1, w2, w_id):
    """Pure-JAX f32 reference matching the PyTorch module semantics."""
    mean = jnp.mean(x, axis=2, keepdims=True)
    var = jnp.mean((x - mean) ** 2, axis=2, keepdims=True)
    xn = (x - mean) / jnp.sqrt(var + EPS)
    xn = xn * ln_w[None, :, :, None] + ln_b[None, :, :, None]
    dn = ("NCHW", "OIHW", "NCHW")
    h = jax.lax.conv_general_dilated(xn, w1, (1, 1), [(1, 1), (1, 1)],
                                     dimension_numbers=dn)
    h = jnp.maximum(h, 0.0) ** 2
    h = jax.lax.conv_general_dilated(h, w2, (1, 1), [(1, 1), (1, 1)],
                                     dimension_numbers=dn)
    xid = jax.lax.conv_general_dilated(x, w_id[:, :, None, None], (1, 1),
                                       [(0, 0), (0, 0)], dimension_numbers=dn)
    return xid + h


if __name__ == "__main__":
    key = jax.random.PRNGKey(0)
    B, Cin, Cout, H, W = 2, 4, 8, 16, 16   # features == H == 16

    k1, k2, k3, k4, k5, k6 = jax.random.split(key, 6)
    x = jax.random.normal(k1, (B, Cin, H, W), jnp.float32)

    # Deterministic synthetic parameters (shapes per module __init__):
    ln_w = 1.0 + 0.1 * jax.random.normal(k5, (Cin, H), jnp.float32)
    ln_b = 0.1 * jax.random.normal(k6, (Cin, H), jnp.float32)
    w1 = jax.random.normal(k2, (Cout, Cin, 3, 3), jnp.float32) * 0.1
    w2 = jax.random.normal(k3, (Cout, Cout, 3, 3), jnp.float32) * 0.1
    w_id = jax.random.normal(k4, (Cout, Cin), jnp.float32) * 0.1  # 1x1 identity

    out = jax.block_until_ready(res_block_forward(x, ln_w, ln_b, w1, w2, w_id))

    ref = ref_forward(x, ln_w, ln_b, w1, w2, w_id)
    err = float(jnp.max(jnp.abs(out - ref)))
    assert out.shape == (B, Cout, H, W), out.shape
    # LayerNorm is now exact f32; remaining tolerance bounds only the bf16 MXU
    # operands (f32 accumulation) of the two 3x3 convs.
    assert jnp.allclose(out, ref, atol=3e-2, rtol=3e-2), f"max abs err {err}"
    print("KERNEL_OK")
</pallas_src>

<mosaic_0001>
module attributes {stable_mosaic.version = 11 : i64} {
  func.func @probe(%arg0: memref<8x128xf32, #tpu.memory_space<vmem>>, %arg1: memref<8x128xf32, #tpu.memory_space<vmem>>) attributes {dimension_semantics = [], scalar_prefetch = 0 : i64, scratch_operands = 0 : i64, tpu.core_type = #tpu.core_type<tc>} {
    %c0 = arith.constant 0 : index
    %c0_0 = arith.constant 0 : index
    %0 = vector.load %arg0[%c0, %c0_0] : memref<8x128xf32, #tpu.memory_space<vmem>>, vector<8x128xf32>
    %c1_i32 = arith.constant 1 : i32
    %1 = tpu.dynamic_rotate %0 by %c1_i32 dim 1 : vector<8x128xf32>, i32 -> vector<8x128xf32>
    %c0_1 = arith.constant 0 : index
    %c0_2 = arith.constant 0 : index
    %2 = vector.load %arg1[%c0_1, %c0_2] : memref<8x128xf32, #tpu.memory_space<vmem>>, vector<8x128xf32>
    tpu.vector_store %arg1[%c0_1, %c0_2], %1 {strides = array<i32>} : memref<8x128xf32, #tpu.memory_space<vmem>>, vector<8x128xf32>,
    return
  }
}

</mosaic_0001>

<llo_original>
// kernel: tpu_custom_call.1
$region0: #{tpu_custom_call.1}
  #allocation0 [shape = 'u32[]', space=smem, size = 0x4, offset = 0x4, fixed_abs, tag = 'smem constant byte address 0x4 - core index']
  #allocation1 [shape = 'u32[144,128]{1,0:T(1,128)}', space=vmem, size = 0x12000, scoped, tag = 'internal scratch']
  %s0 = inlined_call_operand.hbm [shape: f32[8,128], index: 0, kind: input, shape index: {}]
  %s1 = inlined_call_operand.hbm [shape: f32[8,128], index: 1, kind: output, shape index: {}]
  %s2 = sld [smem:[#allocation0]]
  $region18: #{tpu_custom_call.1} parent=0
    _
  %s4 = ssub.s32 1, %s2
  %s5 = scalar_select 0, %s4, %s2
  $region1: #{tpu_custom_call.1} parent=0
    #allocation2 [shape = 'u8[4096]{0}', space=vmem, size = 0x1000, scoped, tag = 'input window, operand 0, single buffered']
    #allocation3 [shape = 's32[1]{0}', space=sflag, size = 0x4, scoped, tag = 'scoped memory for tpu_custom_call.1']
    #allocation4 [shape = 's32[1]{0}', space=sflag, size = 0x4, scoped, tag = 'scoped memory for tpu_custom_call.1']
    #allocation5 [shape = 'u8[4096]{0}', space=vmem, size = 0x1000, scoped, tag = 'output window, operand 0, single buffered']
    %6 = vsyncpa [#allocation3], 0
    %7 = vsyncpa [#allocation4], 0
    // Predicated region
    $region2: #{tpu_custom_call.1} parent=1 // pred_check
      _
    $region3: #{tpu_custom_call.1} parent=1 // pred_check_branch
      %9 = sbr.rel (0) target = $region5
    $region4: #{tpu_custom_call.1} parent=1 // pred_region
      %s11 = ssub.s32 128, 128
      %12 = vsyncadd [#allocation3], %s11
      %s14 = sshll.u32 [#allocation2], 4
      %s15 = int_to_ptr.vmem [resolvable:$true] %s14
      %17 = dma.hbm_to_vmem [thread:$0]  %s0, 128, %s15, [#allocation3]
    $region5: #{tpu_custom_call.1} parent=1 // pred_fallthru
      _
    // Predicated region
    $region6: #{tpu_custom_call.1} parent=1 // pred_check
      _
    $region7: #{tpu_custom_call.1} parent=1 // pred_check_branch
      %19 = sbr.rel (0) target = $region9
    $region8: #{tpu_custom_call.1} parent=1 // pred_region
      %20 = dma.done [#allocation3], 128
    $region9: #{tpu_custom_call.1} parent=1 // pred_fallthru
      _
    %v21 = vld [vmem:[#allocation2] sm:$0xff]
    %22 = vrot.lane.b32.xlu0 %v21, 1
    %v23 = vpop.permute.xlu0 %22
    %24 = vst [vmem:[#allocation5] sm:$0xff] %v23
    // Predicated region
    $region10: #{tpu_custom_call.1} parent=1 // pred_check
      _
    $region11: #{tpu_custom_call.1} parent=1 // pred_check_branch
      %26 = sbr.rel (0) target = $region13
    $region12: #{tpu_custom_call.1} parent=1 // pred_region
      %s28 = ssub.s32 128, 128
      %29 = vsyncadd [#allocation4], %s28
      %s31 = sshll.u32 [#allocation5], 4
      %s32 = int_to_ptr.vmem [resolvable:$true] %s31
      %34 = dma.vmem_to_hbm [thread:$0]  %s32, 128, %s1, [#allocation4]
    $region13: #{tpu_custom_call.1} parent=1 // pred_fallthru
      _
    // Predicated region
    $region14: #{tpu_custom_call.1} parent=1 // pred_check
      _
    $region15: #{tpu_custom_call.1} parent=1 // pred_check_branch
      %36 = sbr.rel (0) target = $region17
    $region16: #{tpu_custom_call.1} parent=1 // pred_region
      %37 = dma.done [#allocation4], 128
    $region17: #{tpu_custom_call.1} parent=1 // pred_fallthru
      _
    %38 = vsyncpa [#allocation3], 1
    %39 = vsyncpa [#allocation4], 1

</llo_original>
